<compile_context>
chip_gen: v5e
topology: v5e:2x2
jax: 0.10.0
libtpu: 0.0.40
codegen_flags: <defaults>
</compile_context>

<pallas_src>
import jax
import jax.numpy as jnp
from jax.experimental import pallas as pl
from jax.experimental.pallas import tpu as pltpu


def _round_up(x: int, m: int) -> int:
    return ((x + m - 1) // m) * m


def _omni_drive_kernel(dt_ref, state_ref, control_ref, out_ref):
    # Blocks are (tile_m, 128) f32: lane- and sublane-dense, pure VPU
    # elementwise, full unmasked stores.  dt lives in SMEM.
    out_ref[...] = state_ref[...] + control_ref[...] * dt_ref[0]


@jax.jit
def _omni_drive_forward_jit(state: jax.Array, control: jax.Array,
                            dt: jax.Array) -> jax.Array:
    N, Ds = state.shape
    _, Dc = control.shape
    assert Ds >= 2 and Dc >= 2

    flat_len = 2 * N
    rows = pl.cdiv(flat_len, 128)            # static python int
    rows_min = _round_up(max(rows, 1), 8)

    # Tile selection:
    #  - tiny inputs: one minimal (8, 128) block.
    #  - medium inputs: split into ~2 blocks so v7x's 2 TensorCores both work.
    #  - large inputs: cap at 2048 rows (1 MiB f32 / array block).
    if rows_min <= 8:
        tile_m = 8
    elif rows_min <= 2 * 2048:
        tile_m = _round_up(pl.cdiv(rows_min, 2), 8)
    else:
        tile_m = 2048

    rows_pad = _round_up(rows_min, tile_m)
    flat_pad = rows_pad * 128

    # Row-major flatten of the (x, y) columns -> [x0, y0, x1, y1, ...].
    # No transpose; under jit the slice/flatten/pad fuse into one pass.
    state_flat = state[:, :2].reshape(-1)
    control_flat = control[:, :2].reshape(-1)
    pad = flat_pad - flat_len
    if pad:
        state_flat = jnp.pad(state_flat, (0, pad))
        control_flat = jnp.pad(control_flat, (0, pad))
    state_blk = state_flat.reshape(rows_pad, 128)
    control_blk = control_flat.reshape(rows_pad, 128)

    dt_arr = jnp.reshape(dt.astype(jnp.float32), (1,))

    grid = (rows_pad // tile_m,)
    out_blk = pl.pallas_call(
        _omni_drive_kernel,
        out_shape=jax.ShapeDtypeStruct((rows_pad, 128), state.dtype),
        grid_spec=pl.GridSpec(
            grid=grid,
            in_specs=[
                pl.BlockSpec(memory_space=pltpu.MemorySpace.SMEM),    # dt (1,)
                pl.BlockSpec((tile_m, 128), lambda i: (i, 0)),        # state
                pl.BlockSpec((tile_m, 128), lambda i: (i, 0)),        # control
            ],
            out_specs=pl.BlockSpec((tile_m, 128), lambda i: (i, 0)),
        ),
        compiler_params=pltpu.CompilerParams(
            dimension_semantics=("parallel",)),
    )(dt_arr, state_blk, control_blk)

    # (rows_pad, 128) -> (2N,) -> (N, 2): row-major reshape, no transpose.
    return out_blk.reshape(-1)[:flat_len].reshape(N, 2)


def omni_drive_forward(state: jax.Array, control: jax.Array,
                       dt: float = 0.1) -> jax.Array:
    """Pallas implementation of OmniDriveModel.forward.

    state:   (N, Ds) float32, Ds >= 2  (x, y, [theta, ...])
    control: (N, Dc) float32, Dc >= 2  (vx, vy, [w, ...])
    returns: (N, 2)  float32           columns [x_next, y_next]
    """
    return _omni_drive_forward_jit(state, control,
                                   jnp.asarray(dt, dtype=jnp.float32))


def _reference(state, control, dt=0.1):
    x = state[:, 0] + control[:, 0] * dt
    y = state[:, 1] + control[:, 1] * dt
    return jnp.stack([x, y], axis=0).T  # == torch.vstack([x, y]).T


if __name__ == "__main__":
    key = jax.random.PRNGKey(0)
    k_state, k_ctrl = jax.random.split(key)

    # Small shapes consistent with an omni-drive MPPI rollout step:
    # N = 16 samples, state = (x, y, theta), control = (vx, vy, w).
    N, DS, DC = 16, 3, 3
    dt = 0.1
    state = jax.random.normal(k_state, (N, DS), dtype=jnp.float32)
    control = jax.random.normal(k_ctrl, (N, DC), dtype=jnp.float32)

    out = omni_drive_forward(state, control, dt=dt)
    out = jax.block_until_ready(out)

    ref = _reference(state, control, dt=dt)
    assert out.shape == (N, 2), out.shape
    assert out.dtype == jnp.float32, out.dtype
    assert jnp.allclose(out, ref, atol=1e-6, rtol=1e-6), "mismatch vs reference"

    # Larger, non-multiple-of-128 N (typical MPPI sample count) to exercise the
    # padded multi-block (2-grid-step) path and a different dt without recompile.
    N2 = 1000
    state2 = jax.random.normal(jax.random.PRNGKey(1), (N2, DS), dtype=jnp.float32)
    control2 = jax.random.normal(jax.random.PRNGKey(2), (N2, DC), dtype=jnp.float32)
    out2 = jax.block_until_ready(omni_drive_forward(state2, control2, dt=0.05))
    ref2 = _reference(state2, control2, dt=0.05)
    assert out2.shape == (N2, 2)
    assert jnp.allclose(out2, ref2, atol=1e-6, rtol=1e-6), "mismatch vs reference (N=1000)"

    print("KERNEL_OK")
</pallas_src>

<mosaic_0001>
module attributes {stable_mosaic.version = 11 : i64} {
  func.func @_omni_drive_kernel(%arg0: i32, %arg1: memref<1xf32, #tpu.memory_space<smem>>, %arg2: memref<8x128xf32, #tpu.memory_space<vmem>>, %arg3: memref<8x128xf32, #tpu.memory_space<vmem>>, %arg4: memref<8x128xf32, #tpu.memory_space<vmem>>) attributes {dimension_semantics = [#tpu.dimension_semantics<parallel>], iteration_bounds = array<i64: 1>, scalar_prefetch = 0 : i64, scratch_operands = 0 : i64, tpu.core_type = #tpu.core_type<tc>, window_params = [{transform_indices = @transform_0, window_bounds = array<i64: 1>}, {transform_indices = @transform_1, window_bounds = array<i64: 8, 128>}, {transform_indices = @transform_2, window_bounds = array<i64: 8, 128>}, {transform_indices = @transform_3, window_bounds = array<i64: 8, 128>}]} {
    %c0 = arith.constant 0 : index
    %c0_0 = arith.constant 0 : index
    %0 = vector.load %arg2[%c0, %c0_0] : memref<8x128xf32, #tpu.memory_space<vmem>>, vector<8x128xf32>
    %c0_1 = arith.constant 0 : index
    %c0_2 = arith.constant 0 : index
    %1 = vector.load %arg3[%c0_1, %c0_2] : memref<8x128xf32, #tpu.memory_space<vmem>>, vector<8x128xf32>
    %c0_3 = arith.constant 0 : index
    %2 = memref.load %arg1[%c0_3] : memref<1xf32, #tpu.memory_space<smem>>
    %3 = vector.broadcast %2 : f32 to vector<8x128xf32>
    %4 = arith.mulf %1, %3 : vector<8x128xf32>
    %5 = arith.addf %0, %4 : vector<8x128xf32>
    %c0_4 = arith.constant 0 : index
    %c0_5 = arith.constant 0 : index
    %6 = vector.load %arg4[%c0_4, %c0_5] : memref<8x128xf32, #tpu.memory_space<vmem>>, vector<8x128xf32>
    tpu.vector_store %arg4[%c0_4, %c0_5], %5 {strides = array<i32>} : memref<8x128xf32, #tpu.memory_space<vmem>>, vector<8x128xf32>,
    return
  }
  func.func @transform_0(%arg0: i32) -> i32 {
    %c0_i32 = arith.constant 0 : i32
    %c0_i32_0 = arith.constant 0 : i32
    return %c0_i32 : i32
  }
  func.func @transform_1(%arg0: i32) -> (i32, i32) {
    %c0_i32 = arith.constant 0 : i32
    %c0_i32_0 = arith.constant 0 : i32
    return %arg0, %c0_i32 : i32, i32
  }
  func.func @transform_2(%arg0: i32) -> (i32, i32) {
    %c0_i32 = arith.constant 0 : i32
    %c0_i32_0 = arith.constant 0 : i32
    return %arg0, %c0_i32 : i32, i32
  }
  func.func @transform_3(%arg0: i32) -> (i32, i32) {
    %c0_i32 = arith.constant 0 : i32
    %c0_i32_0 = arith.constant 0 : i32
    return %arg0, %c0_i32 : i32, i32
  }
}

</mosaic_0001>

<llo_original>
// kernel: _omni_drive_forward_jit.1
$region0: #{_omni_drive_forward_jit.1}
  #allocation0 [shape = 'u32[]', space=smem, size = 0x4, offset = 0x4, fixed_abs, tag = 'smem constant byte address 0x4 - core index']
  #allocation1 [shape = 'u32[72,128]{1,0:T(1,128)}', space=vmem, size = 0x9000, scoped, tag = 'internal scratch']
  #allocation2 [shape = 'f32[1]{0:T(128)S(6)}', space=smem, size = 0x200, scoped, tag = 'scoped memory for _omni_drive_forward_jit.1']
  %s0 = inlined_call_operand.<no memory space> [shape: f32[1], index: 0, kind: input, shape index: {}]
  %s1 = inlined_call_operand.vmem [shape: f32[8,128], index: 1, kind: input, shape index: {}]
  %s2 = inlined_call_operand.vmem [shape: f32[8,128], index: 2, kind: input, shape index: {}]
  %s3 = inlined_call_operand.vmem [shape: f32[8,128], index: 3, kind: output, shape index: {}]
  %s4 = sld [smem:[#allocation0]]
  $region22: #{_omni_drive_forward_jit.1} parent=0
    _
  %s6 = ssub.s32 1, %s4
  %s7 = scalar_select 0, %s6, %s4
  %8 = sst [smem:[#allocation2]] %s0
  // Predicated region
  $region2: #{_omni_drive_forward_jit.1} parent=0 // pred_check
    _
  $region3: #{_omni_drive_forward_jit.1} parent=0 // pred_check_branch
    %10 = sbr.rel (0) target = $region5
  $region4: #{_omni_drive_forward_jit.1} parent=0 // pred_region
    _
  $region5: #{_omni_drive_forward_jit.1} parent=0 // pred_fallthru
    _
  // Predicated region
  $region6: #{_omni_drive_forward_jit.1} parent=0 // pred_check
    _
  $region7: #{_omni_drive_forward_jit.1} parent=0 // pred_check_branch
    %12 = sbr.rel (0) target = $region9
  $region8: #{_omni_drive_forward_jit.1} parent=0 // pred_region
    _
  $region9: #{_omni_drive_forward_jit.1} parent=0 // pred_fallthru
    _
  // Predicated region
  $region10: #{_omni_drive_forward_jit.1} parent=0 // pred_check
    _
  $region11: #{_omni_drive_forward_jit.1} parent=0 // pred_check_branch
    %14 = sbr.rel (0) target = $region13
  $region12: #{_omni_drive_forward_jit.1} parent=0 // pred_region
    _
  $region13: #{_omni_drive_forward_jit.1} parent=0 // pred_fallthru
    _
  %v15 = vld [vmem:[%s1] sm:$0xff]
  %v16 = vld [vmem:[%s2] sm:$0xff]
  %s17 = sld [smem:[#allocation2]]
  %v18 = vstv %s17
  %v19 = vmul.f32 %v16, %v18
  %v20 = vadd.f32 %v15, %v19
  %21 = vst [vmem:[%s3] sm:$0xff] %v20
  // Predicated region
  $region14: #{_omni_drive_forward_jit.1} parent=0 // pred_check
    _
  $region15: #{_omni_drive_forward_jit.1} parent=0 // pred_check_branch
    %23 = sbr.rel (0) target = $region17
  $region16: #{_omni_drive_forward_jit.1} parent=0 // pred_region
    _
  $region17: #{_omni_drive_forward_jit.1} parent=0 // pred_fallthru
    _
  // Predicated region
  $region18: #{_omni_drive_forward_jit.1} parent=0 // pred_check
    _
  $region19: #{_omni_drive_forward_jit.1} parent=0 // pred_check_branch
    %25 = sbr.rel (0) target = $region21
  $region20: #{_omni_drive_forward_jit.1} parent=0 // pred_region
    _
  $region21: #{_omni_drive_forward_jit.1} parent=0 // pred_fallthru
    _

</llo_original>
